<compile_context>
chip_gen: v5e
topology: v5e:2x2
jax: 0.10.0
libtpu: 0.0.40
codegen_flags: <defaults>
</compile_context>

<pallas_src>
import functools

import jax
import jax.numpy as jnp
from jax.experimental import pallas as pl
from jax.experimental.pallas import tpu as pltpu


LANE = 128  # lane width; feature dims are padded to multiples of this.


def _round_up(x, m):
    return (x + m - 1) // m * m


def _sublane_pack(dtype):
    # rows per packed sublane tile: 8 for 4-byte, 16 for 2-byte, 32 for 1-byte dtypes.
    return max(8, 32 // jnp.dtype(dtype).itemsize)


def _default_batch_tile():
    # 128-row tiles on v5e (128x128 MXU); 256 on v6e/v7x (256x256 MXU).
    try:
        kind = jax.devices()[0].device_kind.lower()
    except Exception:
        kind = ""
    if "v5e" in kind or "v5 lite" in kind or "v5litepod" in kind:
        return 128
    return 256


def _vmem_ceiling_bytes():
    # Never request the entire physical VMEM (leave headroom for Mosaic scratch).
    try:
        cap = int(pltpu.get_tpu_info().vmem_capacity_bytes)
    except Exception:
        cap = 128 * 2**20
    return min(int(0.75 * cap), 96 * 2**20)


def _mlp_kernel(*refs, n_layers):
    # refs = (x_ref, w0, b0, w1, b1, ..., w_{L-1}, b_{L-1}, out_ref)
    x_ref = refs[0]
    out_ref = refs[-1]
    param_refs = refs[1:-1]
    assert len(param_refs) == 2 * n_layers

    h = x_ref[...]
    for i in range(n_layers):
        w = param_refs[2 * i][...]
        b = param_refs[2 * i + 1][...].astype(jnp.float32)
        if i > 0:
            h = jnp.tanh(h)          # hidden activation (nn.Tanh), f32 on the EUP
            # dropout(p=0.0) -> identity
        # MXU operands stay in the parameter dtype (cast only at the dot); f32 accumulate.
        h = jnp.dot(h.astype(w.dtype), w, preferred_element_type=jnp.float32) + b
    out_ref[...] = h.astype(out_ref.dtype)


def pad_mlp_params(params):
    """Zero-pad every feature dim to a multiple of LANE.  Call ONCE at init time
    (hoisted out of the forward path).  Returns (padded_params, insize, outsize)."""
    sizes = [params[0][0].shape[0]] + [w.shape[1] for w, _ in params]
    padded_sizes = [_round_up(s, LANE) for s in sizes]
    padded = []
    for i, (w, b) in enumerate(params):
        fi_p, fo_p = padded_sizes[i], padded_sizes[i + 1]
        w_p = jnp.pad(w, ((0, fi_p - w.shape[0]), (0, fo_p - w.shape[1])))
        b_p = jnp.pad(b, ((0, 0), (0, fo_p - b.shape[1])))
        padded.append((w_p, b_p))
    return padded, sizes[0], sizes[-1]


def mlp_forward(x, padded_params, *, outsize=None, batch_tile=None,
                x_buffers=None, weight_buffers=1):
    """x: [B, insize]; padded_params: list of (W [in_p, out_p], b [1, out_p]) from
    pad_mlp_params (all feature dims multiples of 128).  Returns [B, outsize]."""
    B, insize = x.shape
    n_layers = len(padded_params)
    widths = [padded_params[0][0].shape[0]] + [w.shape[1] for w, _ in padded_params]
    assert all(s % LANE == 0 for s in widths), \
        "params must be pre-padded with pad_mlp_params (hoisted out of the call path)"
    insize_p, out_p = widths[0], widths[-1]
    if outsize is None:
        outsize = out_p
    dtype = x.dtype
    itemsize = jnp.dtype(dtype).itemsize

    # ---- lane-dense input padding (exact for a tanh MLP) ----
    x_p = x if insize == insize_p else jnp.pad(x, ((0, 0), (0, insize_p - insize)))

    # ---- batch tiling: MXU-aligned tile, sublane-pack rounded ----
    pack = _sublane_pack(dtype)
    if batch_tile is None:
        batch_tile = _default_batch_tile()
        b_pack = _round_up(B, pack)
        if b_pack <= batch_tile:
            # Small batch: don't pad up to a full MXU tile of dead rows.  Split in
            # two grid steps (pipelining / v7x megacore) only if each half still
            # fills >= 64 MXU rows; otherwise one tile of the (pack-rounded) batch.
            half = _round_up(-(-b_pack // 2), pack)
            batch_tile = half if half >= 64 else b_pack
    batch_tile = max(pack, _round_up(batch_tile, pack))
    B_p = _round_up(B, batch_tile)
    if B_p != B:
        x_p = jnp.pad(x_p, ((0, B_p - B), (0, 0)))
    grid = (B_p // batch_tile,)

    if x_buffers is None:
        # narrow/shallow MLPs finish a step faster than one HBM fetch -> deepen pipeline
        x_buffers = 3 if max(widths) <= 256 else 2

    flat_params = []
    for w, b in padded_params:
        flat_params.extend([w, b])

    # ---- VMEM budget ----
    param_bytes = sum(w.size * w.dtype.itemsize + b.size * b.dtype.itemsize
                      for w, b in padded_params)
    p_itemsize = jnp.dtype(padded_params[0][0].dtype).itemsize
    max_pair = max(widths[i] + widths[i + 1] for i in range(n_layers))
    est = (x_buffers * batch_tile * insize_p * itemsize        # pipelined x tiles
           + 2 * batch_tile * out_p * itemsize                 # double-buffered out tiles
           + weight_buffers * param_bytes                      # resident (single-buffered) params
           + batch_tile * max_pair * 4                         # two live f32 activations / layer
           + batch_tile * max(widths) * p_itemsize)            # h.astype(w.dtype) operand copy
    vmem_limit = int(min(_vmem_ceiling_bytes(), max(32 * 2**20, int(1.5 * est))))

    # ---- scheduling hint for XLA around the custom call ----
    flops = 2 * B_p * sum(widths[i] * widths[i + 1] for i in range(n_layers))
    transcendentals = B_p * sum(widths[1:-1]) if n_layers > 1 else 0
    bytes_accessed = x_p.size * itemsize + param_bytes + B_p * out_p * itemsize
    cost = pl.CostEstimate(flops=int(flops), transcendentals=int(transcendentals),
                           bytes_accessed=int(bytes_accessed))

    kernel = functools.partial(_mlp_kernel, n_layers=n_layers)

    def _call(use_buffer_hints):
        def spec(shape, index_map, buffers):
            if use_buffer_hints and buffers is not None and hasattr(pl, "Buffered"):
                try:
                    return pl.BlockSpec(shape, index_map,
                                        pipeline_mode=pl.Buffered(buffers))
                except TypeError:
                    pass
            return pl.BlockSpec(shape, index_map)

        # x/out tiled over batch; weights/biases constant blocks (single-buffered).
        in_specs = [spec((batch_tile, insize_p), lambda i: (i, 0), x_buffers)]
        for w, b in padded_params:
            in_specs.append(spec(w.shape, lambda i: (0, 0), weight_buffers))
            in_specs.append(spec(b.shape, lambda i: (0, 0), weight_buffers))
        out_spec = pl.BlockSpec((batch_tile, out_p), lambda i: (i, 0))

        return pl.pallas_call(
            kernel,
            out_shape=jax.ShapeDtypeStruct((B_p, out_p), dtype),
            grid_spec=pltpu.PrefetchScalarGridSpec(
                num_scalar_prefetch=0,
                grid=grid,
                in_specs=in_specs,
                out_specs=out_spec,
            ),
            compiler_params=pltpu.CompilerParams(
                dimension_semantics=("parallel",),
                vmem_limit_bytes=vmem_limit,
            ),
            cost_estimate=cost,
        )(x_p, *flat_params)

    try:
        out = _call(True)
    except Exception:
        # Portability fallback: JAX versions without pipeline_mode / Buffered lowering.
        out = _call(False)

    return out[:B, :outsize]


def init_mlp_params(key, insize, outsize, hiddens, dtype=jnp.float32):
    """Deterministic synthetic init (shapes match nn.Linear of the reference).
    Use dtype=jnp.bfloat16 for the bf16 MXU weight path (f32 accumulation kept)."""
    layer_sizes = [insize] + list(hiddens) + [outsize]
    params = []
    for i in range(len(layer_sizes) - 1):
        fan_in, fan_out = layer_sizes[i], layer_sizes[i + 1]
        key, kw, kb = jax.random.split(key, 3)
        bound = 1.0 / jnp.sqrt(fan_in)
        # Stored as [in, out] (transpose of PyTorch's [out, in]).
        w = jax.random.uniform(kw, (fan_in, fan_out), jnp.float32, -bound, bound)
        b = jax.random.uniform(kb, (1, fan_out), jnp.float32, -bound, bound)
        params.append((w.astype(dtype), b.astype(dtype)))
    return params


def mlp_reference(x, params):
    """Pure-JAX reference matching the PyTorch forward."""
    w, b = params[0]
    out = x.astype(jnp.float32) @ w.astype(jnp.float32) + b.astype(jnp.float32)
    for w, b in params[1:]:
        out = jnp.tanh(out)
        out = out @ w.astype(jnp.float32) + b.astype(jnp.float32)
    return out


if __name__ == "__main__":
    key = jax.random.PRNGKey(0)
    insize, outsize, hiddens = 32, 16, (64, 64)
    B = 8

    kx, kp = jax.random.split(key)
    x = jax.random.normal(kx, (B, insize), jnp.float32)
    params = init_mlp_params(kp, insize, outsize, hiddens)

    # Pad parameters ONCE (hoisted out of the per-call path).
    padded_params, _, out_features = pad_mlp_params(params)
    padded_params = jax.block_until_ready(padded_params)

    out = mlp_forward(x, padded_params, outsize=out_features)
    out = jax.block_until_ready(out)

    ref = mlp_reference(x, params)
    assert out.shape == (B, outsize), out.shape
    assert jnp.allclose(out, ref.astype(out.dtype), atol=1e-5, rtol=1e-5), (
        float(jnp.max(jnp.abs(out - ref)))
    )
    print("KERNEL_OK")
</pallas_src>

<mosaic_0001>
module attributes {stable_mosaic.version = 11 : i64} {
  func.func @_mlp_kernel(%arg0: i32, %arg1: memref<8x128xf32, #tpu.memory_space<vmem>>, %arg2: memref<128x128xf32, #tpu.memory_space<vmem>>, %arg3: memref<1x128xf32, #tpu.memory_space<vmem>>, %arg4: memref<128x128xf32, #tpu.memory_space<vmem>>, %arg5: memref<1x128xf32, #tpu.memory_space<vmem>>, %arg6: memref<128x128xf32, #tpu.memory_space<vmem>>, %arg7: memref<1x128xf32, #tpu.memory_space<vmem>>, %arg8: memref<8x128xf32, #tpu.memory_space<vmem>>) attributes {dimension_semantics = [#tpu.dimension_semantics<parallel>], iteration_bounds = array<i64: 1>, scalar_prefetch = 0 : i64, scratch_operands = 0 : i64, tpu.core_type = #tpu.core_type<tc>, window_params = [{transform_indices = @transform_0, window_bounds = array<i64: 8, 128>}, {pipeline_mode = #tpu.pipeline_mode<synchronous>, transform_indices = @transform_1, window_bounds = array<i64: 128, 128>}, {pipeline_mode = #tpu.pipeline_mode<synchronous>, transform_indices = @transform_2, window_bounds = array<i64: 1, 128>}, {pipeline_mode = #tpu.pipeline_mode<synchronous>, transform_indices = @transform_3, window_bounds = array<i64: 128, 128>}, {pipeline_mode = #tpu.pipeline_mode<synchronous>, transform_indices = @transform_4, window_bounds = array<i64: 1, 128>}, {pipeline_mode = #tpu.pipeline_mode<synchronous>, transform_indices = @transform_5, window_bounds = array<i64: 128, 128>}, {pipeline_mode = #tpu.pipeline_mode<synchronous>, transform_indices = @transform_6, window_bounds = array<i64: 1, 128>}, {transform_indices = @transform_7, window_bounds = array<i64: 8, 128>}]} {
    %c0 = arith.constant 0 : index
    %c0_0 = arith.constant 0 : index
    %0 = vector.load %arg1[%c0, %c0_0] : memref<8x128xf32, #tpu.memory_space<vmem>>, vector<8x128xf32>
    %c0_1 = arith.constant 0 : index
    %c0_2 = arith.constant 0 : index
    %1 = vector.load %arg2[%c0_1, %c0_2] : memref<128x128xf32, #tpu.memory_space<vmem>>, vector<128x128xf32>
    %c0_3 = arith.constant 0 : index
    %c0_4 = arith.constant 0 : index
    %2 = vector.load %arg3[%c0_3, %c0_4] : memref<1x128xf32, #tpu.memory_space<vmem>>, vector<1x128xf32>
    %cst = arith.constant dense<0.000000e+00> : vector<8x128xf32>
    %3 = tpu.matmul %0, %1, %cst {dimension_numbers = #tpu.dot_dimension_numbers<[1], [0], [0], [1], [0, 0, 1, 1], [], []>} : vector<8x128xf32>, vector<128x128xf32>, vector<8x128xf32> -> vector<8x128xf32>
    %4 = vector.broadcast %2 : vector<1x128xf32> to vector<8x128xf32>
    %5 = arith.addf %3, %4 : vector<8x128xf32>
    %c0_5 = arith.constant 0 : index
    %c0_6 = arith.constant 0 : index
    %6 = vector.load %arg4[%c0_5, %c0_6] : memref<128x128xf32, #tpu.memory_space<vmem>>, vector<128x128xf32>
    %c0_7 = arith.constant 0 : index
    %c0_8 = arith.constant 0 : index
    %7 = vector.load %arg5[%c0_7, %c0_8] : memref<1x128xf32, #tpu.memory_space<vmem>>, vector<1x128xf32>
    %8 = math.tanh %5 : vector<8x128xf32>
    %cst_9 = arith.constant dense<0.000000e+00> : vector<8x128xf32>
    %9 = tpu.matmul %8, %6, %cst_9 {dimension_numbers = #tpu.dot_dimension_numbers<[1], [0], [0], [1], [0, 0, 1, 1], [], []>} : vector<8x128xf32>, vector<128x128xf32>, vector<8x128xf32> -> vector<8x128xf32>
    %10 = vector.broadcast %7 : vector<1x128xf32> to vector<8x128xf32>
    %11 = arith.addf %9, %10 : vector<8x128xf32>
    %c0_10 = arith.constant 0 : index
    %c0_11 = arith.constant 0 : index
    %12 = vector.load %arg6[%c0_10, %c0_11] : memref<128x128xf32, #tpu.memory_space<vmem>>, vector<128x128xf32>
    %c0_12 = arith.constant 0 : index
    %c0_13 = arith.constant 0 : index
    %13 = vector.load %arg7[%c0_12, %c0_13] : memref<1x128xf32, #tpu.memory_space<vmem>>, vector<1x128xf32>
    %14 = math.tanh %11 : vector<8x128xf32>
    %cst_14 = arith.constant dense<0.000000e+00> : vector<8x128xf32>
    %15 = tpu.matmul %14, %12, %cst_14 {dimension_numbers = #tpu.dot_dimension_numbers<[1], [0], [0], [1], [0, 0, 1, 1], [], []>} : vector<8x128xf32>, vector<128x128xf32>, vector<8x128xf32> -> vector<8x128xf32>
    %16 = vector.broadcast %13 : vector<1x128xf32> to vector<8x128xf32>
    %17 = arith.addf %15, %16 : vector<8x128xf32>
    %c0_15 = arith.constant 0 : index
    %c0_16 = arith.constant 0 : index
    %18 = vector.load %arg8[%c0_15, %c0_16] : memref<8x128xf32, #tpu.memory_space<vmem>>, vector<8x128xf32>
    tpu.vector_store %arg8[%c0_15, %c0_16], %17 {strides = array<i32>} : memref<8x128xf32, #tpu.memory_space<vmem>>, vector<8x128xf32>,
    return
  }
  func.func @transform_0(%arg0: i32) -> (i32, i32) {
    %c0_i32 = arith.constant 0 : i32
    %c0_i32_0 = arith.constant 0 : i32
    return %arg0, %c0_i32 : i32, i32
  }
  func.func @transform_1(%arg0: i32) -> (i32, i32) {
    %c0_i32 = arith.constant 0 : i32
    %c0_i32_0 = arith.constant 0 : i32
    %c0_i32_1 = arith.constant 0 : i32
    return %c0_i32, %c0_i32_0 : i32, i32
  }
  func.func @transform_2(%arg0: i32) -> (i32, i32) {
    %c0_i32 = arith.constant 0 : i32
    %c0_i32_0 = arith.constant 0 : i32
    %c0_i32_1 = arith.constant 0 : i32
    return %c0_i32, %c0_i32_0 : i32, i32
  }
  func.func @transform_3(%arg0: i32) -> (i32, i32) {
    %c0_i32 = arith.constant 0 : i32
    %c0_i32_0 = arith.constant 0 : i32
    %c0_i32_1 = arith.constant 0 : i32
    return %c0_i32, %c0_i32_0 : i32, i32
  }
  func.func @transform_4(%arg0: i32) -> (i32, i32) {
    %c0_i32 = arith.constant 0 : i32
    %c0_i32_0 = arith.constant 0 : i32
    %c0_i32_1 = arith.constant 0 : i32
    return %c0_i32, %c0_i32_0 : i32, i32
  }
  func.func @transform_5(%arg0: i32) -> (i32, i32) {
    %c0_i32 = arith.constant 0 : i32
    %c0_i32_0 = arith.constant 0 : i32
    %c0_i32_1 = arith.constant 0 : i32
    return %c0_i32, %c0_i32_0 : i32, i32
  }
  func.func @transform_6(%arg0: i32) -> (i32, i32) {
    %c0_i32 = arith.constant 0 : i32
    %c0_i32_0 = arith.constant 0 : i32
    %c0_i32_1 = arith.constant 0 : i32
    return %c0_i32, %c0_i32_0 : i32, i32
  }
  func.func @transform_7(%arg0: i32) -> (i32, i32) {
    %c0_i32 = arith.constant 0 : i32
    %c0_i32_0 = arith.constant 0 : i32
    return %arg0, %c0_i32 : i32, i32
  }
}

</mosaic_0001>

<llo_original>
// kernel: tpu_custom_call.1
$region0: #{tpu_custom_call.1}
  #allocation0 [shape = 'u32[]', space=smem, size = 0x4, offset = 0x4, fixed_abs, tag = 'smem constant byte address 0x4 - core index']
  #allocation1 [shape = 'u32[72,128]{1,0:T(1,128)}', space=vmem, size = 0x9000, scoped, tag = 'internal scratch']
  %s0 = inlined_call_operand.hbm [shape: f32[8,128], index: 0, kind: input, shape index: {}]
  %s1 = inlined_call_operand.hbm [shape: f32[128,128], index: 1, kind: input, shape index: {}]
  %s2 = inlined_call_operand.vmem [shape: f32[1,128], index: 2, kind: input, shape index: {}]
  %s3 = inlined_call_operand.hbm [shape: f32[128,128], index: 3, kind: input, shape index: {}]
  %s4 = inlined_call_operand.vmem [shape: f32[1,128], index: 4, kind: input, shape index: {}]
  %s5 = inlined_call_operand.hbm [shape: f32[128,128], index: 5, kind: input, shape index: {}]
  %s6 = inlined_call_operand.vmem [shape: f32[1,128], index: 6, kind: input, shape index: {}]
  %s7 = inlined_call_operand.hbm [shape: f32[8,128], index: 7, kind: output, shape index: {}]
  %s8 = sld [smem:[#allocation0]]
  $region54: #{tpu_custom_call.1} parent=0
    _
  %s10 = ssub.s32 1, %s8
  %s11 = scalar_select 0, %s10, %s8
  $region1: #{tpu_custom_call.1} parent=0
    #allocation2 [shape = 'u8[4096]{0}', space=vmem, size = 0x1000, scoped, tag = 'input window, operand 0, single buffered']
    #allocation3 [shape = 's32[1]{0}', space=sflag, size = 0x4, scoped, tag = 'scoped memory for tpu_custom_call.1']
    #allocation4 [shape = 's32[1]{0}', space=sflag, size = 0x4, scoped, tag = 'scoped memory for tpu_custom_call.1']
    #allocation5 [shape = 'u8[65536]{0}', space=vmem, size = 0x10000, scoped, tag = 'input window, operand 1, single buffered']
    #allocation6 [shape = 's32[1]{0}', space=sflag, size = 0x4, scoped, tag = 'scoped memory for tpu_custom_call.1']
    #allocation7 [shape = 'u8[65536]{0}', space=vmem, size = 0x10000, scoped, tag = 'input window, operand 3, single buffered']
    #allocation8 [shape = 'u8[65536]{0}', space=vmem, size = 0x10000, scoped, tag = 'input window, operand 5, single buffered']
    #allocation9 [shape = 's32[1]{0}', space=sflag, size = 0x4, scoped, tag = 'scoped memory for tpu_custom_call.1']
    #allocation10 [shape = 'u8[4096]{0}', space=vmem, size = 0x1000, scoped, tag = 'output window, operand 0, single buffered']
    %12 = vsyncpa [#allocation3], 0
    %13 = vsyncpa [#allocation6], 0
    %14 = vsyncpa [#allocation9], 0
    %15 = vsyncpa [#allocation4], 0
    // Predicated region
    $region2: #{tpu_custom_call.1} parent=1 // pred_check
      _
    $region3: #{tpu_custom_call.1} parent=1 // pred_check_branch
      %17 = sbr.rel (0) target = $region5
    $region4: #{tpu_custom_call.1} parent=1 // pred_region
      %19 = vsyncadd [#allocation3], 0
      %s21 = sshll.u32 %s0, 4
      %s22 = int_to_ptr.hbm [resolvable:$true] %s21
      %s23 = sshll.u32 [#allocation2], 4
      %s24 = int_to_ptr.vmem [resolvable:$true] %s23
      %26 = dma.hbm_to_vmem [thread:$0]  %s22, 128, %s24, [#allocation3]
    $region5: #{tpu_custom_call.1} parent=1 // pred_fallthru
      _
    // Predicated region
    $region6: #{tpu_custom_call.1} parent=1 // pred_check
      _
    $region7: #{tpu_custom_call.1} parent=1 // pred_check_branch
      %28 = sbr.rel (0) target = $region9
    $region8: #{tpu_custom_call.1} parent=1 // pred_region
      %30 = vsyncadd [#allocation6], 0
      %s31 = sshll.u32 %s1, 4
      %s32 = int_to_ptr.hbm [resolvable:$true] %s31
      %s33 = sshll.u32 [#allocation5], 4
      %s34 = int_to_ptr.vmem [resolvable:$true] %s33
      %39 = dma.hbm_to_vmem [thread:$0]  %s32, 2048, %s34, [#allocation6], 128, 128, 8
    $region9: #{tpu_custom_call.1} parent=1 // pred_fallthru
      _
    // Predicated region
    $region10: #{tpu_custom_call.1} parent=1 // pred_check
      _
    $region11: #{tpu_custom_call.1} parent=1 // pred_check_branch
      %41 = sbr.rel (0) target = $region13
    $region12: #{tpu_custom_call.1} parent=1 // pred_region
      _
    $region13: #{tpu_custom_call.1} parent=1 // pred_fallthru
      _
    // Predicated region
    $region14: #{tpu_custom_call.1} parent=1 // pred_check
      _
    $region15: #{tpu_custom_call.1} parent=1 // pred_check_branch
      %43 = sbr.rel (0) target = $region17
    $region16: #{tpu_custom_call.1} parent=1 // pred_region
      %45 = vsyncadd [#allocation6], 0
      %s46 = sshll.u32 %s3, 4
      %s47 = int_to_ptr.hbm [resolvable:$true] %s46
      %s48 = sshll.u32 [#allocation7], 4
      %s49 = int_to_ptr.vmem [resolvable:$true] %s48
      %54 = dma.hbm_to_vmem [thread:$0]  %s47, 2048, %s49, [#allocation6], 128, 128, 8
    $region17: #{tpu_custom_call.1} parent=1 // pred_fallthru
      _
    // Predicated region
    $region18: #{tpu_custom_call.1} parent=1 // pred_check
      _
    $region19: #{tpu_custom_call.1} parent=1 // pred_check_branch
      %56 = sbr.rel (0) target = $region21
    $region20: #{tpu_custom_call.1} parent=1 // pred_region
      _
    $region21: #{tpu_custom_call.1} parent=1 // pred_fallthru
      _
    // Predicated region
    $region22: #{tpu_custom_call.1} parent=1 // pred_check
      _
    $region23: #{tpu_custom_call.1} parent=1 // pred_check_branch
      %58 = sbr.rel (0) target = $region25
    $region24: #{tpu_custom_call.1} parent=1 // pred_region
      %60 = vsyncadd [#allocation9], 0
      %s61 = sshll.u32 %s5, 4
      %s62 = int_to_ptr.hbm [resolvable:$true] %s61
      %s63 = sshll.u32 [#allocation8], 4
      %s64 = int_to_ptr.vmem [resolvable:$true] %s63
      %69 = dma.hbm_to_vmem [thread:$0]  %s62, 2048, %s64, [#allocation9], 128, 128, 8
    $region25: #{tpu_custom_call.1} parent=1 // pred_fallthru
      _
    // Predicated region
    $region26: #{tpu_custom_call.1} parent=1 // pred_check
      _
    $region27: #{tpu_custom_call.1} parent=1 // pred_check_branch
      %71 = sbr.rel (0) target = $region29
    $region28: #{tpu_custom_call.1} parent=1 // pred_region
      _
    $region29: #{tpu_custom_call.1} parent=1 // pred_fallthru
      _
    // Predicated region
    $region30: #{tpu_custom_call.1} parent=1 // pred_check
      _
    $region31: #{tpu_custom_call.1} parent=1 // pred_check_branch
      %73 = sbr.rel (0) target = $region33
    $region32: #{tpu_custom_call.1} parent=1 // pred_region
      %75 = dma.done [#allocation3], 128
    $region33: #{tpu_custom_call.1} parent=1 // pred_fallthru
      _
    // Predicated region
    $region34: #{tpu_custom_call.1} parent=1 // pred_check
      _
    $region35: #{tpu_custom_call.1} parent=1 // pred_check_branch
      %77 = sbr.rel (0) target = $region37
    $region36: #{tpu_custom_call.1} parent=1 // pred_region
      %79 = dma.done [#allocation6], 2048
    $region37: #{tpu_custom_call.1} parent=1 // pred_fallthru
      _
    // Predicated region
    $region38: #{tpu_custom_call.1} parent=1 // pred_check
      _
    $region39: #{tpu_custom_call.1} parent=1 // pred_check_branch
      %81 = sbr.rel (0) target = $region41
    $region40: #{tpu_custom_call.1} parent=1 // pred_region
      %83 = dma.done [#allocation6], 2048
    $region41: #{tpu_custom_call.1} parent=1 // pred_fallthru
      _
    // Predicated region
    $region42: #{tpu_custom_call.1} parent=1 // pred_check
      _
    $region43: #{tpu_custom_call.1} parent=1 // pred_check_branch
      %85 = sbr.rel (0) target = $region45
    $region44: #{tpu_custom_call.1} parent=1 // pred_region
      %87 = dma.done [#allocation9], 2048
    $region45: #{tpu_custom_call.1} parent=1 // pred_fallthru
      _
    %v88 = vld [vmem:[#allocation2] sm:$0xff]
    %v89 = vld [vmem:[#allocation5] sm:$0xff]
    %v90 = vld [vmem:[#allocation5 + $0x8] sm:$0xff]
    %v91 = vld [vmem:[#allocation5 + $0x10] sm:$0xff]
    %v92 = vld [vmem:[#allocation5 + $0x18] sm:$0xff]
    %v93 = vld [vmem:[#allocation5 + $0x20] sm:$0xff]
    %v94 = vld [vmem:[#allocation5 + $0x28] sm:$0xff]
    %v95 = vld [vmem:[#allocation5 + $0x30] sm:$0xff]
    %v96 = vld [vmem:[#allocation5 + $0x38] sm:$0xff]
    %v97 = vld [vmem:[#allocation5 + $0x40] sm:$0xff]
    %v98 = vld [vmem:[#allocation5 + $0x48] sm:$0xff]
    %v99 = vld [vmem:[#allocation5 + $0x50] sm:$0xff]
    %v100 = vld [vmem:[#allocation5 + $0x58] sm:$0xff]
    %v101 = vld [vmem:[#allocation5 + $0x60] sm:$0xff]
    %v102 = vld [vmem:[#allocation5 + $0x68] sm:$0xff]
    %v103 = vld [vmem:[#allocation5 + $0x70] sm:$0xff]
    %v104 = vld [vmem:[#allocation5 + $0x78] sm:$0xff]
    %v105 = vld [vmem:[%s2] sm:$0x1]
    %v107 = vperm.slane %v105, 0
    %109 = vmatpush.msra.mxu0 %v104
    %110 = vmatpush.msra.mxu0 %v103
    %111 = vmatpush.msra.mxu0 %v102
    %112 = vmatpush.msra.mxu0 %v101
    %113 = vmatpush.msra.mxu0 %v100
    %114 = vmatpush.msra.mxu0 %v99
    %115 = vmatpush.msra.mxu0 %v98
    %116 = vmatpush.msra.mxu0 %v97
    %117 = vmatpush.msra.mxu0 %v96
    %118 = vmatpush.msra.mxu0 %v95
    %119 = vmatpush.msra.mxu0 %v94
    %120 = vmatpush.msra.mxu0 %v93
    %121 = vmatpush.msra.mxu0 %v92
    %122 = vmatpush.msra.mxu0 %v91
    %123 = vmatpush.msra.mxu0 %v90
    %124 = vmatpush.msra.mxu0 %v89
    %125 = vmatmul.f32.gmra.mxu0 %v88
    %v126 = vpop.f32.mrf.mxu0
    %v127 = vadd.f32 %v107, %v126
    %128 = vdwg.mxu0
    %v129 = vld [vmem:[#allocation7] sm:$0xff]
    %v130 = vld [vmem:[#allocation7 + $0x8] sm:$0xff]
    %v131 = vld [vmem:[#allocation7 + $0x10] sm:$0xff]
    %v132 = vld [vmem:[#allocation7 + $0x18] sm:$0xff]
    %v133 = vld [vmem:[#allocation7 + $0x20] sm:$0xff]
    %v134 = vld [vmem:[#allocation7 + $0x28] sm:$0xff]
    %v135 = vld [vmem:[#allocation7 + $0x30] sm:$0xff]
    %v136 = vld [vmem:[#allocation7 + $0x38] sm:$0xff]
    %v137 = vld [vmem:[#allocation7 + $0x40] sm:$0xff]
    %v138 = vld [vmem:[#allocation7 + $0x48] sm:$0xff]
    %v139 = vld [vmem:[#allocation7 + $0x50] sm:$0xff]
    %v140 = vld [vmem:[#allocation7 + $0x58] sm:$0xff]
    %v141 = vld [vmem:[#allocation7 + $0x60] sm:$0xff]
    %v142 = vld [vmem:[#allocation7 + $0x68] sm:$0xff]
    %v143 = vld [vmem:[#allocation7 + $0x70] sm:$0xff]
    %v144 = vld [vmem:[#allocation7 + $0x78] sm:$0xff]
    %v145 = vld [vmem:[%s4] sm:$0x1]
    %v146 = vtanh.pop %v127
    %v148 = vperm.slane %v145, 0
    %150 = vmatpush.msra.mxu0 %v144
    %151 = vmatpush.msra.mxu0 %v143
    %152 = vmatpush.msra.mxu0 %v142
    %153 = vmatpush.msra.mxu0 %v141
    %154 = vmatpush.msra.mxu0 %v140
    %155 = vmatpush.msra.mxu0 %v139
    %156 = vmatpush.msra.mxu0 %v138
    %157 = vmatpush.msra.mxu0 %v137
    %158 = vmatpush.msra.mxu0 %v136
    %159 = vmatpush.msra.mxu0 %v135
    %160 = vmatpush.msra.mxu0 %v134
    %161 = vmatpush.msra.mxu0 %v133
    %162 = vmatpush.msra.mxu0 %v132
    %163 = vmatpush.msra.mxu0 %v131
    %164 = vmatpush.msra.mxu0 %v130
    %165 = vmatpush.msra.mxu0 %v129
    %166 = vmatmul.f32.gmra.mxu0 %v146
    %v167 = vpop.f32.mrf.mxu0
    %v168 = vadd.f32 %v148, %v167
    %169 = vdwg.mxu0
    %v170 = vld [vmem:[#allocation8] sm:$0xff]
    %v171 = vld [vmem:[#allocation8 + $0x8] sm:$0xff]
    %v172 = vld [vmem:[#allocation8 + $0x10] sm:$0xff]
    %v173 = vld [vmem:[#allocation8 + $0x18] sm:$0xff]
    %v174 = vld [vmem:[#allocation8 + $0x20] sm:$0xff]
    %v175 = vld [vmem:[#allocation8 + $0x28] sm:$0xff]
    %v176 = vld [vmem:[#allocation8 + $0x30] sm:$0xff]
    %v177 = vld [vmem:[#allocation8 + $0x38] sm:$0xff]
    %v178 = vld [vmem:[#allocation8 + $0x40] sm:$0xff]
    %v179 = vld [vmem:[#allocation8 + $0x48] sm:$0xff]
    %v180 = vld [vmem:[#allocation8 + $0x50] sm:$0xff]
    %v181 = vld [vmem:[#allocation8 + $0x58] sm:$0xff]
    %v182 = vld [vmem:[#allocation8 + $0x60] sm:$0xff]
    %v183 = vld [vmem:[#allocation8 + $0x68] sm:$0xff]
    %v184 = vld [vmem:[#allocation8 + $0x70] sm:$0xff]
    %v185 = vld [vmem:[#allocation8 + $0x78] sm:$0xff]
    %v186 = vld [vmem:[%s6] sm:$0x1]
    %v187 = vtanh.pop %v168
    %v189 = vperm.slane %v186, 0
    %191 = vmatpush.msra.mxu0 %v185
    %192 = vmatpush.msra.mxu0 %v184
    %193 = vmatpush.msra.mxu0 %v183
    %194 = vmatpush.msra.mxu0 %v182
    %195 = vmatpush.msra.mxu0 %v181
    %196 = vmatpush.msra.mxu0 %v180
    %197 = vmatpush.msra.mxu0 %v179
    %198 = vmatpush.msra.mxu0 %v178
    %199 = vmatpush.msra.mxu0 %v177
    %200 = vmatpush.msra.mxu0 %v176
    %201 = vmatpush.msra.mxu0 %v175
    %202 = vmatpush.msra.mxu0 %v174
    %203 = vmatpush.msra.mxu0 %v173
    %204 = vmatpush.msra.mxu0 %v172
    %205 = vmatpush.msra.mxu0 %v171
    %206 = vmatpush.msra.mxu0 %v170
    %207 = vmatmul.f32.gmra.mxu0 %v187
    %v208 = vpop.f32.mrf.mxu0
    %v209 = vadd.f32 %v189, %v208
    %210 = vdwg.mxu0
    %211 = vst [vmem:[#allocation10] sm:$0xff] %v209
    // Predicated region
    $region46: #{tpu_custom_call.1} parent=1 // pred_check
      _
    $region47: #{tpu_custom_call.1} parent=1 // pred_check_branch
      %213 = sbr.rel (0) target = $region49
    $region48: #{tpu_custom_call.1} parent=1 // pred_region
      %215 = vsyncadd [#allocation4], 0
      %s217 = sshll.u32 [#allocation10], 4
      %s218 = int_to_ptr.vmem [resolvable:$true] %s217
      %s219 = sshll.u32 %s7, 4
      %s220 = int_to_ptr.hbm [resolvable:$true] %s219
      %222 = dma.vmem_to_hbm [thread:$0]  %s218, 128, %s220, [#allocation4]
    $region49: #{tpu_custom_call.1} parent=1 // pred_fallthru
      _
    // Predicated region
    $region50: #{tpu_custom_call.1} parent=1 // pred_check
      _
    $region51: #{tpu_custom_call.1} parent=1 // pred_check_branch
      %224 = sbr.rel (0) target = $region53
    $region52: #{tpu_custom_call.1} parent=1 // pred_region
      %226 = dma.done [#allocation4], 128
    $region53: #{tpu_custom_call.1} parent=1 // pred_fallthru
      _
    %227 = vsyncpa [#allocation3], 1
    %228 = vsyncpa [#allocation6], 1
    %229 = vsyncpa [#allocation9], 1
    %230 = vsyncpa [#allocation4], 1

</llo_original>
